<compile_context>
chip_gen: v7x
topology: tpu7x:2x2x1
jax: 0.10.0
libtpu: 0.0.40
codegen_flags: <defaults>
</compile_context>

<pallas_src>
import math

import jax
import jax.numpy as jnp
from jax import lax
from jax.experimental import pallas as pl
from jax.experimental.pallas import tpu as pltpu


def _transfor_fused_kernel(x_ref, w_ref, o_ref):
    """One (batch, row-tile) step of the fused (3x3 o 1x1) convolution.

    x_ref : (1, H+2, W+2, Cin)   zero-padded NHWC input (resident per batch)
    w_ref : (9, Cout, Cin)       folded per-tap weights (conv1 folded in)
    o_ref : (1, Cout, TH*W)      lane-dense output row tile (NCHW-flattened)
    """
    _, _, w_pad, c_in = x_ref.shape
    _, c_out, p = o_ref.shape
    w_out = w_pad - 2          # spatial width W
    tile_h = p // w_out        # output rows per grid step

    row0 = pl.multiple_of(pl.program_id(1) * tile_h, tile_h)

    # f32 accumulator is a single (Cout=8, TH*W=128) vreg -> no scratch needed.
    acc = jnp.zeros((c_out, p), jnp.float32)
    for ky in range(3):
        for kx in range(3):
            # Shifted window for this tap: rows come from an in-kernel slice of
            # the resident padded image (halo handling), columns from a static
            # sublane offset.
            win = x_ref[0, pl.ds(row0 + ky, tile_h), pl.ds(kx, w_out), :]
            win = win.reshape(tile_h * w_out, c_in)          # (P, Cin)
            # (Cout, Cin) x (P, Cin)^T -> (Cout, P): lane-dense MXU result.
            acc = acc + jnp.einsum(
                "ck,pk->cp", w_ref[ky * 3 + kx], win,
                preferred_element_type=jnp.float32)

    o_ref[...] = acc[None].astype(o_ref.dtype)


def _pick_row_tile(h, w):
    """Row-tile height: tile_h | H, tile_h*W lane-aligned when possible."""
    for th in (8, 16, 32, 64, 128):
        if h % th == 0 and (th * w) % 128 == 0:
            return th
    return h  # full-extent block is always legal


def transfor_forward(x_nchw, w1_oihw, w2_oihw):
    """Fused forward pass. Inputs/outputs use PyTorch NCHW / OIHW layouts."""
    n, c_in, h, w = x_nchw.shape
    c_out = w2_oihw.shape[0]
    tile_h = _pick_row_tile(h, w)

    # ---- fold conv1 (1x1) into conv2 (3x3) on the host --------------------
    # w_fused[ky, kx, co, ci] = sum_m w2[co, m, ky, kx] * w1[m, ci]
    w1_mat = w1_oihw[:, :, 0, 0].astype(jnp.float32)                  # (Cmid, Cin)
    w_fused = jnp.einsum("omyx,mi->yxoi",
                         w2_oihw.astype(jnp.float32), w1_mat)         # (3,3,Cout,Cin)
    w_fused = w_fused.reshape(9, c_out, c_in).astype(x_nchw.dtype)

    # ---- layout plumbing only: pad once in HBM, channels-last for the kernel
    x_nhwc = jnp.transpose(x_nchw, (0, 2, 3, 1))
    x_pad = jnp.pad(x_nhwc, ((0, 0), (1, 1), (1, 1), (0, 0)))

    out_flat = pl.pallas_call(
        _transfor_fused_kernel,
        out_shape=jax.ShapeDtypeStruct((n, c_out, h * w), x_nchw.dtype),
        grid_spec=pltpu.PrefetchScalarGridSpec(
            num_scalar_prefetch=0,
            grid=(n, h // tile_h),
            in_specs=[
                # Padded image: block index ignores the row axis, so it is
                # fetched once per batch element and revisited across row tiles.
                pl.BlockSpec((1, h + 2, w + 2, c_in), lambda b, r: (b, 0, 0, 0)),
                # Folded weights: single resident block.
                pl.BlockSpec((9, c_out, c_in), lambda b, r: (0, 0, 0)),
            ],
            # Lane-dense output row tile, written directly in NCHW order.
            out_specs=pl.BlockSpec((1, c_out, tile_h * w), lambda b, r: (b, 0, r)),
        ),
        compiler_params=pltpu.CompilerParams(
            dimension_semantics=("parallel", "parallel"),
            vmem_limit_bytes=32 * 1024 * 1024,
        ),
    )(x_pad, w_fused)

    # Free contiguous reshape: (N, Cout, H*W) -> (N, Cout, H, W) == NCHW.
    return out_flat.reshape(n, c_out, h, w)


def kaiming_uniform(key, shape, a=1.0):
    """Matches nn.init.kaiming_uniform_(w, a=a) for conv weights (OIHW)."""
    fan_in = shape[1] * shape[2] * shape[3]
    gain = math.sqrt(2.0 / (1.0 + a * a))
    bound = gain * math.sqrt(3.0 / fan_in)
    return jax.random.uniform(key, shape, jnp.float32, -bound, bound)


if __name__ == "__main__":
    # Small shapes consistent with the module.
    N, in_channel, mid_channel, out_channel, H, W = 2, 4, 8, 8, 16, 16

    key = jax.random.PRNGKey(0)
    kx, k1, k2 = jax.random.split(key, 3)

    x = jax.random.normal(kx, (N, in_channel, H, W), jnp.float32)       # NCHW
    w1 = kaiming_uniform(k1, (mid_channel, in_channel, 1, 1), a=1.0)    # OIHW
    w2 = kaiming_uniform(k2, (out_channel, mid_channel, 3, 3), a=1.0)   # OIHW

    y = transfor_forward(x, w1, w2)
    y = jax.block_until_ready(y)

    # Reference check against XLA convolutions (same semantics as PyTorch).
    mid_ref = lax.conv_general_dilated(
        x, w1, (1, 1), "VALID", dimension_numbers=("NCHW", "OIHW", "NCHW"))
    y_ref = lax.conv_general_dilated(
        mid_ref, w2, (1, 1), ((1, 1), (1, 1)),
        dimension_numbers=("NCHW", "OIHW", "NCHW"))
    assert y.shape == (N, out_channel, H, W)
    assert jnp.allclose(y, y_ref, atol=1e-4, rtol=1e-4)

    print("KERNEL_OK")
</pallas_src>

<mosaic_0001>
module attributes {stable_mosaic.version = 11 : i64} {
  func.func @_transfor_fused_kernel(%arg0: i32, %arg1: i32, %arg2: memref<1x18x18x4xf32, #tpu.memory_space<vmem>>, %arg3: memref<9x8x4xf32, #tpu.memory_space<vmem>>, %arg4: memref<1x8x128xf32, #tpu.memory_space<vmem>>) attributes {dimension_semantics = [#tpu.dimension_semantics<parallel>, #tpu.dimension_semantics<parallel>], iteration_bounds = array<i64: 2, 2>, scalar_prefetch = 0 : i64, scratch_operands = 0 : i64, tpu.core_type = #tpu.core_type<tc>, window_params = [{transform_indices = @transform_0, window_bounds = array<i64: 1, 18, 18, 4>}, {pipeline_mode = #tpu.pipeline_mode<synchronous>, transform_indices = @transform_1, window_bounds = array<i64: 9, 8, 4>}, {transform_indices = @transform_2, window_bounds = array<i64: 1, 8, 128>}]} {
    %c8_i32 = arith.constant 8 : i32
    %0 = arith.muli %arg1, %c8_i32 : i32
    %1 = tpu.assume_multiple %0, 8 : i32
    %cst = arith.constant 0.000000e+00 : f32
    %2 = vector.broadcast %cst : f32 to vector<8x128xf32>
    %c0_i32 = arith.constant 0 : i32
    %3 = arith.addi %1, %c0_i32 : i32
    %c0 = arith.constant 0 : index
    %4 = arith.index_cast %3 : i32 to index
    %c0_0 = arith.constant 0 : index
    %c0_1 = arith.constant 0 : index
    %5 = vector.load %arg2[%c0, %4, %c0_0, %c0_1] : memref<1x18x18x4xf32, #tpu.memory_space<vmem>>, vector<1x8x16x4xf32>
    %6 = vector.shape_cast %5 : vector<1x8x16x4xf32> to vector<8x16x4xf32>
    %7 = vector.shape_cast %6 : vector<8x16x4xf32> to vector<128x4xf32>
    %c0_2 = arith.constant 0 : index
    %c0_3 = arith.constant 0 : index
    %c0_4 = arith.constant 0 : index
    %8 = vector.load %arg3[%c0_2, %c0_3, %c0_4] : memref<9x8x4xf32, #tpu.memory_space<vmem>>, vector<1x8x4xf32>
    %9 = vector.shape_cast %8 : vector<1x8x4xf32> to vector<8x4xf32>
    "tpu.trace_start"() <{level = 10 : i32, message = "ck,pk->cp"}> : () -> ()
    %cst_5 = arith.constant dense<0.000000e+00> : vector<8x128xf32>
    %10 = tpu.matmul %9, %7, %cst_5 {dimension_numbers = #tpu.dot_dimension_numbers<[1], [1], [0], [0], [0, 0, 1, 0], [], []>} : vector<8x4xf32>, vector<128x4xf32>, vector<8x128xf32> -> vector<8x128xf32>
    "tpu.trace_stop"() : () -> ()
    %11 = arith.addf %2, %10 : vector<8x128xf32>
    %c0_i32_6 = arith.constant 0 : i32
    %12 = arith.addi %1, %c0_i32_6 : i32
    %c0_7 = arith.constant 0 : index
    %13 = arith.index_cast %12 : i32 to index
    %c1 = arith.constant 1 : index
    %c0_8 = arith.constant 0 : index
    %14 = vector.load %arg2[%c0_7, %13, %c1, %c0_8] : memref<1x18x18x4xf32, #tpu.memory_space<vmem>>, vector<1x8x16x4xf32>
    %15 = vector.shape_cast %14 : vector<1x8x16x4xf32> to vector<8x16x4xf32>
    %16 = vector.shape_cast %15 : vector<8x16x4xf32> to vector<128x4xf32>
    %c1_9 = arith.constant 1 : index
    %c0_10 = arith.constant 0 : index
    %c0_11 = arith.constant 0 : index
    %17 = vector.load %arg3[%c1_9, %c0_10, %c0_11] : memref<9x8x4xf32, #tpu.memory_space<vmem>>, vector<1x8x4xf32>
    %18 = vector.shape_cast %17 : vector<1x8x4xf32> to vector<8x4xf32>
    "tpu.trace_start"() <{level = 10 : i32, message = "ck,pk->cp"}> : () -> ()
    %cst_12 = arith.constant dense<0.000000e+00> : vector<8x128xf32>
    %19 = tpu.matmul %18, %16, %cst_12 {dimension_numbers = #tpu.dot_dimension_numbers<[1], [1], [0], [0], [0, 0, 1, 0], [], []>} : vector<8x4xf32>, vector<128x4xf32>, vector<8x128xf32> -> vector<8x128xf32>
    "tpu.trace_stop"() : () -> ()
    %20 = arith.addf %11, %19 : vector<8x128xf32>
    %c0_i32_13 = arith.constant 0 : i32
    %21 = arith.addi %1, %c0_i32_13 : i32
    %c0_14 = arith.constant 0 : index
    %22 = arith.index_cast %21 : i32 to index
    %c2 = arith.constant 2 : index
    %c0_15 = arith.constant 0 : index
    %23 = vector.load %arg2[%c0_14, %22, %c2, %c0_15] : memref<1x18x18x4xf32, #tpu.memory_space<vmem>>, vector<1x8x16x4xf32>
    %24 = vector.shape_cast %23 : vector<1x8x16x4xf32> to vector<8x16x4xf32>
    %25 = vector.shape_cast %24 : vector<8x16x4xf32> to vector<128x4xf32>
    %c2_16 = arith.constant 2 : index
    %c0_17 = arith.constant 0 : index
    %c0_18 = arith.constant 0 : index
    %26 = vector.load %arg3[%c2_16, %c0_17, %c0_18] : memref<9x8x4xf32, #tpu.memory_space<vmem>>, vector<1x8x4xf32>
    %27 = vector.shape_cast %26 : vector<1x8x4xf32> to vector<8x4xf32>
    "tpu.trace_start"() <{level = 10 : i32, message = "ck,pk->cp"}> : () -> ()
    %cst_19 = arith.constant dense<0.000000e+00> : vector<8x128xf32>
    %28 = tpu.matmul %27, %25, %cst_19 {dimension_numbers = #tpu.dot_dimension_numbers<[1], [1], [0], [0], [0, 0, 1, 0], [], []>} : vector<8x4xf32>, vector<128x4xf32>, vector<8x128xf32> -> vector<8x128xf32>
    "tpu.trace_stop"() : () -> ()
    %29 = arith.addf %20, %28 : vector<8x128xf32>
    %c1_i32 = arith.constant 1 : i32
    %30 = arith.addi %1, %c1_i32 : i32
    %c0_20 = arith.constant 0 : index
    %31 = arith.index_cast %30 : i32 to index
    %c0_21 = arith.constant 0 : index
    %c0_22 = arith.constant 0 : index
    %32 = vector.load %arg2[%c0_20, %31, %c0_21, %c0_22] : memref<1x18x18x4xf32, #tpu.memory_space<vmem>>, vector<1x8x16x4xf32>
    %33 = vector.shape_cast %32 : vector<1x8x16x4xf32> to vector<8x16x4xf32>
    %34 = vector.shape_cast %33 : vector<8x16x4xf32> to vector<128x4xf32>
    %c3 = arith.constant 3 : index
    %c0_23 = arith.constant 0 : index
    %c0_24 = arith.constant 0 : index
    %35 = vector.load %arg3[%c3, %c0_23, %c0_24] : memref<9x8x4xf32, #tpu.memory_space<vmem>>, vector<1x8x4xf32>
    %36 = vector.shape_cast %35 : vector<1x8x4xf32> to vector<8x4xf32>
    "tpu.trace_start"() <{level = 10 : i32, message = "ck,pk->cp"}> : () -> ()
    %cst_25 = arith.constant dense<0.000000e+00> : vector<8x128xf32>
    %37 = tpu.matmul %36, %34, %cst_25 {dimension_numbers = #tpu.dot_dimension_numbers<[1], [1], [0], [0], [0, 0, 1, 0], [], []>} : vector<8x4xf32>, vector<128x4xf32>, vector<8x128xf32> -> vector<8x128xf32>
    "tpu.trace_stop"() : () -> ()
    %38 = arith.addf %29, %37 : vector<8x128xf32>
    %c1_i32_26 = arith.constant 1 : i32
    %39 = arith.addi %1, %c1_i32_26 : i32
    %c0_27 = arith.constant 0 : index
    %40 = arith.index_cast %39 : i32 to index
    %c1_28 = arith.constant 1 : index
    %c0_29 = arith.constant 0 : index
    %41 = vector.load %arg2[%c0_27, %40, %c1_28, %c0_29] : memref<1x18x18x4xf32, #tpu.memory_space<vmem>>, vector<1x8x16x4xf32>
    %42 = vector.shape_cast %41 : vector<1x8x16x4xf32> to vector<8x16x4xf32>
    %43 = vector.shape_cast %42 : vector<8x16x4xf32> to vector<128x4xf32>
    %c4 = arith.constant 4 : index
    %c0_30 = arith.constant 0 : index
    %c0_31 = arith.constant 0 : index
    %44 = vector.load %arg3[%c4, %c0_30, %c0_31] : memref<9x8x4xf32, #tpu.memory_space<vmem>>, vector<1x8x4xf32>
    %45 = vector.shape_cast %44 : vector<1x8x4xf32> to vector<8x4xf32>
    "tpu.trace_start"() <{level = 10 : i32, message = "ck,pk->cp"}> : () -> ()
    %cst_32 = arith.constant dense<0.000000e+00> : vector<8x128xf32>
    %46 = tpu.matmul %45, %43, %cst_32 {dimension_numbers = #tpu.dot_dimension_numbers<[1], [1], [0], [0], [0, 0, 1, 0], [], []>} : vector<8x4xf32>, vector<128x4xf32>, vector<8x128xf32> -> vector<8x128xf32>
    "tpu.trace_stop"() : () -> ()
    %47 = arith.addf %38, %46 : vector<8x128xf32>
    %c1_i32_33 = arith.constant 1 : i32
    %48 = arith.addi %1, %c1_i32_33 : i32
    %c0_34 = arith.constant 0 : index
    %49 = arith.index_cast %48 : i32 to index
    %c2_35 = arith.constant 2 : index
    %c0_36 = arith.constant 0 : index
    %50 = vector.load %arg2[%c0_34, %49, %c2_35, %c0_36] : memref<1x18x18x4xf32, #tpu.memory_space<vmem>>, vector<1x8x16x4xf32>
    %51 = vector.shape_cast %50 : vector<1x8x16x4xf32> to vector<8x16x4xf32>
    %52 = vector.shape_cast %51 : vector<8x16x4xf32> to vector<128x4xf32>
    %c5 = arith.constant 5 : index
    %c0_37 = arith.constant 0 : index
    %c0_38 = arith.constant 0 : index
    %53 = vector.load %arg3[%c5, %c0_37, %c0_38] : memref<9x8x4xf32, #tpu.memory_space<vmem>>, vector<1x8x4xf32>
    %54 = vector.shape_cast %53 : vector<1x8x4xf32> to vector<8x4xf32>
    "tpu.trace_start"() <{level = 10 : i32, message = "ck,pk->cp"}> : () -> ()
    %cst_39 = arith.constant dense<0.000000e+00> : vector<8x128xf32>
    %55 = tpu.matmul %54, %52, %cst_39 {dimension_numbers = #tpu.dot_dimension_numbers<[1], [1], [0], [0], [0, 0, 1, 0], [], []>} : vector<8x4xf32>, vector<128x4xf32>, vector<8x128xf32> -> vector<8x128xf32>
    "tpu.trace_stop"() : () -> ()
    %56 = arith.addf %47, %55 : vector<8x128xf32>
    %c2_i32 = arith.constant 2 : i32
    %57 = arith.addi %1, %c2_i32 : i32
    %c0_40 = arith.constant 0 : index
    %58 = arith.index_cast %57 : i32 to index
    %c0_41 = arith.constant 0 : index
    %c0_42 = arith.constant 0 : index
    %59 = vector.load %arg2[%c0_40, %58, %c0_41, %c0_42] : memref<1x18x18x4xf32, #tpu.memory_space<vmem>>, vector<1x8x16x4xf32>
    %60 = vector.shape_cast %59 : vector<1x8x16x4xf32> to vector<8x16x4xf32>
    %61 = vector.shape_cast %60 : vector<8x16x4xf32> to vector<128x4xf32>
    %c6 = arith.constant 6 : index
    %c0_43 = arith.constant 0 : index
    %c0_44 = arith.constant 0 : index
    %62 = vector.load %arg3[%c6, %c0_43, %c0_44] : memref<9x8x4xf32, #tpu.memory_space<vmem>>, vector<1x8x4xf32>
    %63 = vector.shape_cast %62 : vector<1x8x4xf32> to vector<8x4xf32>
    "tpu.trace_start"() <{level = 10 : i32, message = "ck,pk->cp"}> : () -> ()
    %cst_45 = arith.constant dense<0.000000e+00> : vector<8x128xf32>
    %64 = tpu.matmul %63, %61, %cst_45 {dimension_numbers = #tpu.dot_dimension_numbers<[1], [1], [0], [0], [0, 0, 1, 0], [], []>} : vector<8x4xf32>, vector<128x4xf32>, vector<8x128xf32> -> vector<8x128xf32>
    "tpu.trace_stop"() : () -> ()
    %65 = arith.addf %56, %64 : vector<8x128xf32>
    %c2_i32_46 = arith.constant 2 : i32
    %66 = arith.addi %1, %c2_i32_46 : i32
    %c0_47 = arith.constant 0 : index
    %67 = arith.index_cast %66 : i32 to index
    %c1_48 = arith.constant 1 : index
    %c0_49 = arith.constant 0 : index
    %68 = vector.load %arg2[%c0_47, %67, %c1_48, %c0_49] : memref<1x18x18x4xf32, #tpu.memory_space<vmem>>, vector<1x8x16x4xf32>
    %69 = vector.shape_cast %68 : vector<1x8x16x4xf32> to vector<8x16x4xf32>
    %70 = vector.shape_cast %69 : vector<8x16x4xf32> to vector<128x4xf32>
    %c7 = arith.constant 7 : index
    %c0_50 = arith.constant 0 : index
    %c0_51 = arith.constant 0 : index
    %71 = vector.load %arg3[%c7, %c0_50, %c0_51] : memref<9x8x4xf32, #tpu.memory_space<vmem>>, vector<1x8x4xf32>
    %72 = vector.shape_cast %71 : vector<1x8x4xf32> to vector<8x4xf32>
    "tpu.trace_start"() <{level = 10 : i32, message = "ck,pk->cp"}> : () -> ()
    %cst_52 = arith.constant dense<0.000000e+00> : vector<8x128xf32>
    %73 = tpu.matmul %72, %70, %cst_52 {dimension_numbers = #tpu.dot_dimension_numbers<[1], [1], [0], [0], [0, 0, 1, 0], [], []>} : vector<8x4xf32>, vector<128x4xf32>, vector<8x128xf32> -> vector<8x128xf32>
    "tpu.trace_stop"() : () -> ()
    %74 = arith.addf %65, %73 : vector<8x128xf32>
    %c2_i32_53 = arith.constant 2 : i32
    %75 = arith.addi %1, %c2_i32_53 : i32
    %c0_54 = arith.constant 0 : index
    %76 = arith.index_cast %75 : i32 to index
    %c2_55 = arith.constant 2 : index
    %c0_56 = arith.constant 0 : index
    %77 = vector.load %arg2[%c0_54, %76, %c2_55, %c0_56] : memref<1x18x18x4xf32, #tpu.memory_space<vmem>>, vector<1x8x16x4xf32>
    %78 = vector.shape_cast %77 : vector<1x8x16x4xf32> to vector<8x16x4xf32>
    %79 = vector.shape_cast %78 : vector<8x16x4xf32> to vector<128x4xf32>
    %c8 = arith.constant 8 : index
    %c0_57 = arith.constant 0 : index
    %c0_58 = arith.constant 0 : index
    %80 = vector.load %arg3[%c8, %c0_57, %c0_58] : memref<9x8x4xf32, #tpu.memory_space<vmem>>, vector<1x8x4xf32>
    %81 = vector.shape_cast %80 : vector<1x8x4xf32> to vector<8x4xf32>
    "tpu.trace_start"() <{level = 10 : i32, message = "ck,pk->cp"}> : () -> ()
    %cst_59 = arith.constant dense<0.000000e+00> : vector<8x128xf32>
    %82 = tpu.matmul %81, %79, %cst_59 {dimension_numbers = #tpu.dot_dimension_numbers<[1], [1], [0], [0], [0, 0, 1, 0], [], []>} : vector<8x4xf32>, vector<128x4xf32>, vector<8x128xf32> -> vector<8x128xf32>
    "tpu.trace_stop"() : () -> ()
    %83 = arith.addf %74, %82 : vector<8x128xf32>
    %84 = vector.shape_cast %83 : vector<8x128xf32> to vector<1x8x128xf32>
    %c0_60 = arith.constant 0 : index
    %c0_61 = arith.constant 0 : index
    %c0_62 = arith.constant 0 : index
    %85 = vector.load %arg4[%c0_60, %c0_61, %c0_62] : memref<1x8x128xf32, #tpu.memory_space<vmem>>, vector<1x8x128xf32>
    tpu.vector_store %arg4[%c0_60, %c0_61, %c0_62], %84 {strides = array<i32>} : memref<1x8x128xf32, #tpu.memory_space<vmem>>, vector<1x8x128xf32>,
    return
  }
  func.func @transform_0(%arg0: i32, %arg1: i32) -> (i32, i32, i32, i32) {
    %c0_i32 = arith.constant 0 : i32
    %c0_i32_0 = arith.constant 0 : i32
    %c0_i32_1 = arith.constant 0 : i32
    %c0_i32_2 = arith.constant 0 : i32
    return %arg0, %c0_i32, %c0_i32_0, %c0_i32_1 : i32, i32, i32, i32
  }
  func.func @transform_1(%arg0: i32, %arg1: i32) -> (i32, i32, i32) {
    %c0_i32 = arith.constant 0 : i32
    %c0_i32_0 = arith.constant 0 : i32
    %c0_i32_1 = arith.constant 0 : i32
    %c0_i32_2 = arith.constant 0 : i32
    return %c0_i32, %c0_i32_0, %c0_i32_1 : i32, i32, i32
  }
  func.func @transform_2(%arg0: i32, %arg1: i32) -> (i32, i32, i32) {
    %c0_i32 = arith.constant 0 : i32
    %c0_i32_0 = arith.constant 0 : i32
    return %arg0, %c0_i32, %arg1 : i32, i32, i32
  }
}

</mosaic_0001>

<llo_original>
// kernel: tpu_custom_call.1
$region0: #{tpu_custom_call.1}
  #allocation0 [shape = 'u32[]', space=smem, size = 0x4, offset = 0x4, fixed_abs, tag = 'smem constant byte address 0x4 - core index']
  #allocation1 [shape = 'u32[144,128]{1,0:T(1,128)}', space=vmem, size = 0x12000, scoped, tag = 'internal scratch']
  %s0 = inlined_call_operand.vmem [shape: f32[2,18,18,4], index: 0, kind: input, shape index: {}]
  %s1 = inlined_call_operand.vmem [shape: f32[9,8,4], index: 1, kind: input, shape index: {}]
  %s2 = inlined_call_operand.hbm [shape: f32[2,8,256], index: 2, kind: output, shape index: {}]
  %s3 = sld [smem:[#allocation0]]
  $region41: #{tpu_custom_call.1} parent=0
    _
  %s5 = ssub.s32 1, %s3
  %s6 = scalar_select 0, %s5, %s3
  $region1: #{tpu_custom_call.1} parent=0
    #allocation2 [shape = 'u8[8192]{0}', space=vmem, size = 0x2000, scoped, tag = 'output window, operand 0']
    #allocation3 [shape = 's32[2]{0}', space=sflag, size = 0x8, scoped, tag = 'scoped memory for tpu_custom_call.1']
    %7 = vsyncpa [#allocation3], 0
    %s8 = scalar_lea.sflag [#allocation3], 1
    %9 = vsyncpa %s8, 0
    loop: start=0, step=1, limit=6
    $region2: #{tpu_custom_call.1} parent=1 // loop_pre_header
      _
    $region3: #{tpu_custom_call.1} parent=1 // loop_header
      %s11 = sphi 0, %s15
      %p12 = scmp.ge.s32.totalorder %s11, 6
      %s18 = sphi 0, %s30
      %s19 = sphi 0, %s26
      %s20 = sphi 0, %s18
      %s21 = sphi 0, %s19
      %s22 = sphi 0, %s20
      %s23 = sphi 0, %s21
      %s33 = sphi 0, %s35
      %s36 = sphi 0, %s33
      %s37 = sphi 0, %s36
      %s53 = sphi 0, %s37
      %s57 = sphi 0, %s57
      %s59 = sphi 0, %s57
      %s60 = sphi 0, %s59
      %s74 = sphi 0, %s60
      %s82 = sphi 0, %s84
      %s85 = sphi 0, %s82
      %s86 = sphi 0, %s85
      %s102 = sphi 0, %s86
    $region4: #{tpu_custom_call.1} parent=1 // loop_header_branch
      %14 = sbr.rel (%p12) target = $region8
    $region5: #{tpu_custom_call.1} parent=1 // loop_body
      %s16 = ssub.s32 %s11, 1
      %s17 = ssub.s32 %s11, 2
      %s24 = sadd.s32 1, %s19
      %p25 = scmp.ge.s32.totalorder %s24, 2
      %s26 = scalar_select %p25, 0, %s24
      %s27 = sadd.s32 1, %s18
      %s28 = scalar_select %p25, %s27, %s18
      %p29 = scmp.ge.s32.totalorder %s28, 2
      %s30 = scalar_select %p29, 0, %s28
      %s31 = ssub.s32 %s18, %s30
      %p32 = scmp.eq.s32.totalorder %s31, 0
      %s34 = sadd.s32 %s33, 1
      %s35 = scalar_select %p32, %s33, %s34
      %p38 = pneg %p32
      %p39 = scmp.eq.s32.totalorder %s11, 3
      %p40 = por %p38, %p39
      %p41 = scmp.ne.s32.totalorder %s33, %s36
      %p42 = scmp.eq.s32.totalorder %s11, 0
      %p43 = por %p41, %p42
      %p44 = scmp.ne.s32.totalorder %s33, %s36
      %p45 = scmp.eq.s32.totalorder %s16, 3
      %p46 = por %p44, %p45
      %p47 = scmp.ne.s32.totalorder %s36, %s37
      %p48 = scmp.eq.s32.totalorder %s16, 0
      %p49 = por %p47, %p48
      %p50 = scmp.ne.s32.totalorder %s36, %s37
      %p51 = scmp.eq.s32.totalorder %s17, 3
      %p52 = por %p50, %p51
      %p54 = scmp.ne.s32.totalorder %s37, %s53
      %p55 = scmp.eq.s32.totalorder %s17, 0
      %p56 = por %p54, %p55
      %s58 = sadd.s32 %s57, 1
      %p61 = scmp.eq.s32.totalorder %s11, 3
      %p62 = scmp.ne.s32.totalorder %s57, %s59
      %p63 = scmp.eq.s32.totalorder %s11, 0
      %p64 = por %p62, %p63
      %p65 = scmp.ne.s32.totalorder %s57, %s59
      %p66 = scmp.eq.s32.totalorder %s16, 3
      %p67 = por %p65, %p66
      %p68 = scmp.ne.s32.totalorder %s59, %s60
      %p69 = scmp.eq.s32.totalorder %s16, 0
      %p70 = por %p68, %p69
      %p71 = scmp.ne.s32.totalorder %s59, %s60
      %p72 = scmp.eq.s32.totalorder %s17, 3
      %p73 = por %p71, %p72
      %p75 = scmp.ne.s32.totalorder %s60, %s74
      %p76 = scmp.eq.s32.totalorder %s17, 0
      %p77 = por %p75, %p76
      %s78 = ssub.s32 %s18, %s30
      %s79 = ssub.s32 %s19, %s26
      %s80 = sor.u32 %s78, %s79
      %p81 = scmp.eq.s32.totalorder %s80, 0
      %s83 = sadd.s32 %s82, 1
      %s84 = scalar_select %p81, %s82, %s83
      %p87 = pneg %p81
      %p88 = scmp.eq.s32.totalorder %s11, 3
      %p89 = por %p87, %p88
      %p90 = scmp.ne.s32.totalorder %s82, %s85
      %p91 = scmp.eq.s32.totalorder %s11, 0
      %p92 = por %p90, %p91
      %p93 = scmp.ne.s32.totalorder %s82, %s85
      %p94 = scmp.eq.s32.totalorder %s16, 3
      %p95 = por %p93, %p94
      %p96 = scmp.ne.s32.totalorder %s85, %s86
      %p97 = scmp.eq.s32.totalorder %s16, 0
      %p98 = por %p96, %p97
      %p99 = scmp.ne.s32.totalorder %s85, %s86
      %p100 = scmp.eq.s32.totalorder %s17, 3
      %p101 = por %p99, %p100
      %p103 = scmp.ne.s32.totalorder %s86, %s102
      %p104 = scmp.eq.s32.totalorder %s17, 0
      %p105 = por %p103, %p104
      %p106 = scmp.le.s32.totalorder 1, %s11
      %p107 = scmp.lt.s32.totalorder %s11, 5
      %p108 = pnand %p106, %p107
      %p109 = pneg %p108
      // Predicated region
      $region9: #{tpu_custom_call.1} parent=5 // pred_check
        _
      $region10: #{tpu_custom_call.1} parent=5 // pred_check_branch
        %111 = sbr.rel (%p108) target = $region12
      $region11: #{tpu_custom_call.1} parent=5 // pred_region
        %s112 = ssub.s32 %s11, 1
        // Predicated region
        $region13: #{tpu_custom_call.1} parent=11 // pred_check
          %p113 = pneg %p70
        $region14: #{tpu_custom_call.1} parent=11 // pred_check_branch
          %115 = sbr.rel (%p113) target = $region16
        $region15: #{tpu_custom_call.1} parent=11 // pred_region
          _
        $region16: #{tpu_custom_call.1} parent=11 // pred_fallthru
          _
      $region12: #{tpu_custom_call.1} parent=5 // pred_fallthru
        _
      %p116 = scmp.lt.s32.totalorder %s11, 4
      // Predicated region
      $region17: #{tpu_custom_call.1} parent=5 // pred_check
        %p117 = pneg %p116
      $region18: #{tpu_custom_call.1} parent=5 // pred_check_branch
        %119 = sbr.rel (%p117) target = $region20
      $region19: #{tpu_custom_call.1} parent=5 // pred_region
        // Predicated region
        $region21: #{tpu_custom_call.1} parent=19 // pred_check
          %p120 = pneg %p43
        $region22: #{tpu_custom_call.1} parent=19 // pred_check_branch
          %122 = sbr.rel (%p120) target = $region24
        $region23: #{tpu_custom_call.1} parent=19 // pred_region
          %p123 = scmp.lt.s32.totalorder %s18, 1
          %s124 = scalar_select %p123, %s18, 1
          %s125 = smul.addr %s124, 54
          %s126 = smul.addr %s125, 8
          %s127 = scalar_lea.vmem %s0, %s126
        $region24: #{tpu_custom_call.1} parent=19 // pred_fallthru
          _
      $region20: #{tpu_custom_call.1} parent=5 // pred_fallthru
        _
      %p128 = scmp.le.s32.totalorder 1, %s11
      %p129 = scmp.lt.s32.totalorder %s11, 5
      %p130 = pnand %p128, %p129
      %p131 = pneg %p130
      // Predicated region
      $region25: #{tpu_custom_call.1} parent=5 // pred_check
        _
      $region26: #{tpu_custom_call.1} parent=5 // pred_check_branch
        %133 = sbr.rel (%p130) target = $region28
      $region27: #{tpu_custom_call.1} parent=5 // pred_region
        %s134 = ssub.s32 %s11, 1
        %p135 = scmp.lt.s32.totalorder %s20, 1
        %s136 = scalar_select %p135, %s20, 1
        %s137 = smul.addr %s136, 54
        %s138 = smul.addr %s137, 8
        %s139 = scalar_lea.vmem %s0, %s138
        %p140 = pneg %p49
        %p141 = pneg %p46
        %p142 = pneg %p70
        %p143 = pneg %p67
        %p144 = pneg %p98
        %p145 = pneg %p95
        %s146 = sand.u32 %s85, 1
        %s147 = scalar_lea.sflag [#allocation3], %s146
        %s148 = sand.u32 %s85, 1
        %s149 = smul.addr %s148, 8
        %s150 = scalar_lea.vmem [#allocation2], %s149
        %p151 = scmp.lt.s32.totalorder %s20, 1
        %s152 = scalar_select %p151, %s20, 1
        %s153 = smul.addr %s152, 54
        %s154 = smul.addr %s153, 8
        %s155 = scalar_lea.vmem %s0, %s154
        %s156 = smul.u32 %s21, 8
        %s157 = smul.u32 %s156, 24
        %s158 = scalar_lea.vmem %s155, %s157
        %v159 = vld [vmem:[%s158] sm:$0xff]
        %v160 = vld [vmem:[%s158 + $0x8] sm:$0xff]
        %v161 = vld [vmem:[%s158 + $0x18] sm:$0xff]
        %v162 = vld [vmem:[%s158 + $0x20] sm:$0xff]
        %v163 = vld [vmem:[%s158 + $0x30] sm:$0xff]
        %v164 = vld [vmem:[%s158 + $0x38] sm:$0xff]
        %v165 = vld [vmem:[%s158 + $0x48] sm:$0xff]
        %v166 = vld [vmem:[%s158 + $0x50] sm:$0xff]
        %v167 = vld [vmem:[%s158 + $0x60] sm:$0xff]
        %v168 = vld [vmem:[%s158 + $0x68] sm:$0xff]
        %v169 = vld [vmem:[%s158 + $0x78] sm:$0xff]
        %v170 = vld [vmem:[%s158 + $0x80] sm:$0xff]
        %v171 = vld [vmem:[%s158 + $0x90] sm:$0xff]
        %v172 = vld [vmem:[%s158 + $0x98] sm:$0xff]
        %v173 = vld [vmem:[%s158 + $0xa8] sm:$0xff]
        %v174 = vld [vmem:[%s158 + $0xb0] sm:$0xff]
        %v175 = vld [vmem:[%s1] sm:$0xff]
        %v176 = vld [vmem:[%s158 + $0x1] sm:$0xff]
        %v177 = vld [vmem:[%s158 + $0x9] sm:$0xff]
        %v178 = vld [vmem:[%s158 + $0x19] sm:$0xff]
        %v179 = vld [vmem:[%s158 + $0x21] sm:$0xff]
        %v180 = vld [vmem:[%s158 + $0x31] sm:$0xff]
        %v181 = vld [vmem:[%s158 + $0x39] sm:$0xff]
        %v182 = vld [vmem:[%s158 + $0x49] sm:$0xff]
        %v183 = vld [vmem:[%s158 + $0x51] sm:$0xff]
        %v184 = vld [vmem:[%s158 + $0x61] sm:$0xff]
        %v185 = vld [vmem:[%s158 + $0x69] sm:$0xff]
        %v186 = vld [vmem:[%s158 + $0x79] sm:$0xff]
        %v187 = vld [vmem:[%s158 + $0x81] sm:$0xff]
        %v188 = vld [vmem:[%s158 + $0x91] sm:$0xff]
        %v189 = vld [vmem:[%s158 + $0x99] sm:$0xff]
        %v190 = vld [vmem:[%s158 + $0xa9] sm:$0xff]
        %v191 = vld [vmem:[%s158 + $0xb1] sm:$0xff]
        %s192 = scalar_lea.vmem %s1, 8
        %v193 = vld [vmem:[%s192] sm:$0xff]
        %vm194 = vcmask 31744
        %v196 = vsel %vm194, %v193, 0
        %v199 = vsel %vm194, %v176, 0
        %v202 = vsel %vm194, %v177, 0
        %v205 = vsel %vm194, %v178, 0
        %v208 = vsel %vm194, %v179, 0
        %v211 = vsel %vm194, %v180, 0
        %v214 = vsel %vm194, %v181, 0
        %v217 = vsel %vm194, %v182, 0
        %v220 = vsel %vm194, %v183, 0
        %v223 = vsel %vm194, %v184, 0
        %v226 = vsel %vm194, %v185, 0
        %v229 = vsel %vm194, %v186, 0
        %v232 = vsel %vm194, %v187, 0
        %v235 = vsel %vm194, %v188, 0
        %v238 = vsel %vm194, %v189, 0
        %v241 = vsel %vm194, %v190, 0
        %v244 = vsel %vm194, %v191, 0
        %246 = vmatprep.subr.mxu0 0.0
        %247 = vmatpush1.xpose.msra.mxu0 %v199
        %248 = vmatprep.subr.mxu0 0.0
        %249 = vmatpush1.xpose.msra.mxu0 %v202
        %250 = vmatprep.subr.mxu0 0.0
        %251 = vmatpush1.xpose.msra.mxu0 %v205
        %252 = vmatprep.subr.mxu0 0.0
        %253 = vmatpush1.xpose.msra.mxu0 %v208
        %254 = vmatprep.subr.mxu0 0.0
        %255 = vmatpush1.xpose.msra.mxu0 %v211
        %256 = vmatprep.subr.mxu0 0.0
        %257 = vmatpush1.xpose.msra.mxu0 %v214
        %258 = vmatprep.subr.mxu0 0.0
        %259 = vmatpush1.xpose.msra.mxu0 %v217
        %260 = vmatprep.subr.mxu0 0.0
        %261 = vmatpush1.xpose.msra.mxu0 %v220
        %262 = vmatprep.subr.mxu0 0.0
        %263 = vmatpush1.xpose.msra.mxu0 %v223
        %264 = vmatprep.subr.mxu0 0.0
        %265 = vmatpush1.xpose.msra.mxu0 %v226
        %266 = vmatprep.subr.mxu0 0.0
        %267 = vmatpush1.xpose.msra.mxu0 %v229
        %268 = vmatprep.subr.mxu0 0.0
        %269 = vmatpush1.xpose.msra.mxu0 %v232
        %270 = vmatprep.subr.mxu0 0.0
        %271 = vmatpush1.xpose.msra.mxu0 %v235
        %272 = vmatprep.subr.mxu0 0.0
        %273 = vmatpush1.xpose.msra.mxu0 %v238
        %274 = vmatprep.subr.mxu0 0.0
        %275 = vmatpush1.xpose.msra.mxu0 %v241
        %276 = vmatprep.subr.mxu0 0.0
        %277 = vmatpush1.xpose.msra.mxu0 %v244
        %278 = vmatprep.subr.mxu0 0.0
        %279 = vmatpush1.xpose.msra.mxu0 0.0
        %280 = vmatprep.subr.mxu0 0.0
        %281 = vmatpush1.xpose.msra.mxu0 0.0
        %282 = vmatprep.subr.mxu0 0.0
        %283 = vmatpush1.xpose.msra.mxu0 0.0
        %284 = vmatprep.subr.mxu0 0.0
        %285 = vmatpush1.xpose.msra.mxu0 0.0
        %286 = vmatprep.subr.mxu0 0.0
        %287 = vmatpush1.xpose.msra.mxu0 0.0
        %288 = vmatprep.subr.mxu0 0.0
        %289 = vmatpush1.xpose.msra.mxu0 0.0
        %290 = vmatprep.subr.mxu0 0.0
        %291 = vmatpush1.xpose.msra.mxu0 0.0
        %292 = vmatprep.subr.mxu0 0.0
        %293 = vmatpush1.xpose.msra.mxu0 0.0
        %294 = vmatprep.subr.mxu0 0.0
        %295 = vmatpush1.xpose.msra.mxu0 0.0
        %296 = vmatprep.subr.mxu0 0.0
        %297 = vmatpush1.xpose.msra.mxu0 0.0
        %298 = vmatprep.subr.mxu0 0.0
        %299 = vmatpush1.xpose.msra.mxu0 0.0
        %300 = vmatprep.subr.mxu0 0.0
        %301 = vmatpush1.xpose.msra.mxu0 0.0
        %302 = vmatprep.subr.mxu0 0.0
        %303 = vmatpush1.xpose.msra.mxu0 0.0
        %304 = vmatprep.subr.mxu0 0.0
        %305 = vmatpush1.xpose.msra.mxu0 0.0
        %306 = vmatprep.subr.mxu0 0.0
        %307 = vmatpush1.xpose.msra.mxu0 0.0
        %308 = vmatprep.subr.mxu0 0.0
        %309 = vmatpush1.xpose.msra.mxu0 0.0
        %310 = vmatprep.mubr.f32.mxu0 0.0
        %311 = vmatmul.mubr.f32.gmra.mrb[0].mxu0 %v196
        %v312 = vpop.f32.mrb[0].mxu0
        %v313 = vadd.f32 0.0, %v312
        %v314 = vpop.f32.mrb[0].mxu0
        %315 = vdwg.mxu0
        %v317 = vsel %vm194, %v175, 0
        %v320 = vsel %vm194, %v159, 0
        %v323 = vsel %vm194, %v160, 0
        %v326 = vsel %vm194, %v161, 0
        %v329 = vsel %vm194, %v162, 0
        %v332 = vsel %vm194, %v163, 0
        %v335 = vsel %vm194, %v164, 0
        %v338 = vsel %vm194, %v165, 0
        %v341 = vsel %vm194, %v166, 0
        %v344 = vsel %vm194, %v167, 0
        %v347 = vsel %vm194, %v168, 0
        %v350 = vsel %vm194, %v169, 0
        %v353 = vsel %vm194, %v170, 0
        %v356 = vsel %vm194, %v171, 0
        %v359 = vsel %vm194, %v172, 0
        %v362 = vsel %vm194, %v173, 0
        %v365 = vsel %vm194, %v174, 0
        %367 = vmatprep.subr.mxu0 0.0
        %368 = vmatpush1.xpose.msra.mxu0 %v320
        %369 = vmatprep.subr.mxu0 0.0
        %370 = vmatpush1.xpose.msra.mxu0 %v323
        %371 = vmatprep.subr.mxu0 0.0
        %372 = vmatpush1.xpose.msra.mxu0 %v326
        %373 = vmatprep.subr.mxu0 0.0
        %374 = vmatpush1.xpose.msra.mxu0 %v329
        %375 = vmatprep.subr.mxu0 0.0
        %376 = vmatpush1.xpose.msra.mxu0 %v332
        %377 = vmatprep.subr.mxu0 0.0
        %378 = vmatpush1.xpose.msra.mxu0 %v335
        %379 = vmatprep.subr.mxu0 0.0
        %380 = vmatpush1.xpose.msra.mxu0 %v338
        %381 = vmatprep.subr.mxu0 0.0
        %382 = vmatpush1.xpose.msra.mxu0 %v341
        %383 = vmatprep.subr.mxu0 0.0
        %384 = vmatpush1.xpose.msra.mxu0 %v344
        %385 = vmatprep.subr.mxu0 0.0
        %386 = vmatpush1.xpose.msra.mxu0 %v347
        %387 = vmatprep.subr.mxu0 0.0
        %388 = vmatpush1.xpose.msra.mxu0 %v350
        %389 = vmatprep.subr.mxu0 0.0
        %390 = vmatpush1.xpose.msra.mxu0 %v353
        %391 = vmatprep.subr.mxu0 0.0
        %392 = vmatpush1.xpose.msra.mxu0 %v356
        %393 = vmatprep.subr.mxu0 0.0
        %394 = vmatpush1.xpose.msra.mxu0 %v359
        %395 = vmatprep.subr.mxu0 0.0
        %396 = vmatpush1.xpose.msra.mxu0 %v362
        %397 = vmatprep.subr.mxu0 0.0
        %398 = vmatpush1.xpose.msra.mxu0 %v365
        %399 = vmatprep.subr.mxu0 0.0
        %400 = vmatpush1.xpose.msra.mxu0 0.0
        %401 = vmatprep.subr.mxu0 0.0
        %402 = vmatpush1.xpose.msra.mxu0 0.0
        %403 = vmatprep.subr.mxu0 0.0
        %404 = vmatpush1.xpose.msra.mxu0 0.0
        %405 = vmatprep.subr.mxu0 0.0
        %406 = vmatpush1.xpose.msra.mxu0 0.0
        %407 = vmatprep.subr.mxu0 0.0
        %408 = vmatpush1.xpose.msra.mxu0 0.0
        %409 = vmatprep.subr.mxu0 0.0
        %410 = vmatpush1.xpose.msra.mxu0 0.0
        %411 = vmatprep.subr.mxu0 0.0
        %412 = vmatpush1.xpose.msra.mxu0 0.0
        %413 = vmatprep.subr.mxu0 0.0
        %414 = vmatpush1.xpose.msra.mxu0 0.0
        %415 = vmatprep.subr.mxu0 0.0
        %416 = vmatpush1.xpose.msra.mxu0 0.0
        %417 = vmatprep.subr.mxu0 0.0
        %418 = vmatpush1.xpose.msra.mxu0 0.0
        %419 = vmatprep.subr.mxu0 0.0
        %420 = vmatpush1.xpose.msra.mxu0 0.0
        %421 = vmatprep.subr.mxu0 0.0
        %422 = vmatpush1.xpose.msra.mxu0 0.0
        %423 = vmatprep.subr.mxu0 0.0
        %424 = vmatpush1.xpose.msra.mxu0 0.0
        %425 = vmatprep.subr.mxu0 0.0
        %426 = vmatpush1.xpose.msra.mxu0 0.0
        %427 = vmatprep.subr.mxu0 0.0
        %428 = vmatpush1.xpose.msra.mxu0 0.0
        %429 = vmatprep.subr.mxu0 0.0
        %430 = vmatpush1.xpose.msra.mxu0 0.0
        %431 = vmatprep.mubr.f32.mxu0 0.0
        %432 = vmatmul.mubr.f32.gmra.mrb[0].mxu0 %v317
        %v433 = vpop.f32.mrb[0].mxu0
        %v434 = vadd.f32 %v313, %v433
        %v435 = vpop.f32.mrb[0].mxu0
        %436 = vdwg.mxu0
        %v437 = vld [vmem:[%s158 + $0x2] sm:$0xff]
        %v438 = vld [vmem:[%s158 + $0xa] sm:$0xff]
        %v439 = vld [vmem:[%s158 + $0x1a] sm:$0xff]
        %v440 = vld [vmem:[%s158 + $0x22] sm:$0xff]
        %v441 = vld [vmem:[%s158 + $0x32] sm:$0xff]
        %v442 = vld [vmem:[%s158 + $0x3a] sm:$0xff]
        %v443 = vld [vmem:[%s158 + $0x4a] sm:$0xff]
        %v444 = vld [vmem:[%s158 + $0x52] sm:$0xff]
        %v445 = vld [vmem:[%s158 + $0x62] sm:$0xff]
        %v446 = vld [vmem:[%s158 + $0x6a] sm:$0xff]
        %v447 = vld [vmem:[%s158 + $0x7a] sm:$0xff]
        %v448 = vld [vmem:[%s158 + $0x82] sm:$0xff]
        %v449 = vld [vmem:[%s158 + $0x92] sm:$0xff]
        %v450 = vld [vmem:[%s158 + $0x9a] sm:$0xff]
        %v451 = vld [vmem:[%s158 + $0xaa] sm:$0xff]
        %v452 = vld [vmem:[%s158 + $0xb2] sm:$0xff]
        %s453 = scalar_lea.vmem %s1, 16
        %v454 = vld [vmem:[%s453] sm:$0xff]
        %v456 = vsel %vm194, %v454, 0
        %v459 = vsel %vm194, %v437, 0
        %v462 = vsel %vm194, %v438, 0
        %v465 = vsel %vm194, %v439, 0
        %v468 = vsel %vm194, %v440, 0
        %v471 = vsel %vm194, %v441, 0
        %v474 = vsel %vm194, %v442, 0
        %v477 = vsel %vm194, %v443, 0
        %v480 = vsel %vm194, %v444, 0
        %v483 = vsel %vm194, %v445, 0
        %v486 = vsel %vm194, %v446, 0
        %v489 = vsel %vm194, %v447, 0
        %v492 = vsel %vm194, %v448, 0
        %v495 = vsel %vm194, %v449, 0
        %v498 = vsel %vm194, %v450, 0
        %v501 = vsel %vm194, %v451, 0
        %v504 = vsel %vm194, %v452, 0
        %506 = vmatprep.subr.mxu0 0.0
        %507 = vmatpush1.xpose.msra.mxu0 %v459
        %508 = vmatprep.subr.mxu0 0.0
        %509 = vmatpush1.xpose.msra.mxu0 %v462
        %510 = vmatprep.subr.mxu0 0.0
        %511 = vmatpush1.xpose.msra.mxu0 %v465
        %512 = vmatprep.subr.mxu0 0.0
        %513 = vmatpush1.xpose.msra.mxu0 %v468
        %514 = vmatprep.subr.mxu0 0.0
        %515 = vmatpush1.xpose.msra.mxu0 %v471
        %516 = vmatprep.subr.mxu0 0.0
        %517 = vmatpush1.xpose.msra.mxu0 %v474
        %518 = vmatprep.subr.mxu0 0.0
        %519 = vmatpush1.xpose.msra.mxu0 %v477
        %520 = vmatprep.subr.mxu0 0.0
        %521 = vmatpush1.xpose.msra.mxu0 %v480
        %522 = vmatprep.subr.mxu0 0.0
        %523 = vmatpush1.xpose.msra.mxu0 %v483
        %524 = vmatprep.subr.mxu0 0.0
        %525 = vmatpush1.xpose.msra.mxu0 %v486
        %526 = vmatprep.subr.mxu0 0.0
        %527 = vmatpush1.xpose.msra.mxu0 %v489
        %528 = vmatprep.subr.mxu0 0.0
        %529 = vmatpush1.xpose.msra.mxu0 %v492
        %530 = vmatprep.subr.mxu0 0.0
        %531 = vmatpush1.xpose.msra.mxu0 %v495
        %532 = vmatprep.subr.mxu0 0.0
        %533 = vmatpush1.xpose.msra.mxu0 %v498
        %534 = vmatprep.subr.mxu0 0.0
        %535 = vmatpush1.xpose.msra.mxu0 %v501
        %536 = vmatprep.subr.mxu0 0.0
        %537 = vmatpush1.xpose.msra.mxu0 %v504
        %538 = vmatprep.subr.mxu0 0.0
        %539 = vmatpush1.xpose.msra.mxu0 0.0
        %540 = vmatprep.subr.mxu0 0.0
        %541 = vmatpush1.xpose.msra.mxu0 0.0
        %542 = vmatprep.subr.mxu0 0.0
        %543 = vmatpush1.xpose.msra.mxu0 0.0
        %544 = vmatprep.subr.mxu0 0.0
        %545 = vmatpush1.xpose.msra.mxu0 0.0
        %546 = vmatprep.subr.mxu0 0.0
        %547 = vmatpush1.xpose.msra.mxu0 0.0
        %548 = vmatprep.subr.mxu0 0.0
        %549 = vmatpush1.xpose.msra.mxu0 0.0
        %550 = vmatprep.subr.mxu0 0.0
        %551 = vmatpush1.xpose.msra.mxu0 0.0
        %552 = vmatprep.subr.mxu0 0.0
        %553 = vmatpush1.xpose.msra.mxu0 0.0
        %554 = vmatprep.subr.mxu0 0.0
        %555 = vmatpush1.xpose.msra.mxu0 0.0
        %556 = vmatprep.subr.mxu0 0.0
        %557 = vmatpush1.xpose.msra.mxu0 0.0
        %558 = vmatprep.subr.mxu0 0.0
        %559 = vmatpush1.xpose.msra.mxu0 0.0
        %560 = vmatprep.subr.mxu0 0.0
        %561 = vmatpush1.xpose.msra.mxu0 0.0
        %562 = vmatprep.subr.mxu0 0.0
        %563 = vmatpush1.xpose.msra.mxu0 0.0
        %564 = vmatprep.subr.mxu0 0.0
        %565 = vmatpush1.xpose.msra.mxu0 0.0
        %566 = vmatprep.subr.mxu0 0.0
        %567 = vmatpush1.xpose.msra.mxu0 0.0
        %568 = vmatprep.subr.mxu0 0.0
        %569 = vmatpush1.xpose.msra.mxu0 0.0
        %570 = vmatprep.mubr.f32.mxu0 0.0
        %571 = vmatmul.mubr.f32.gmra.mrb[0].mxu0 %v456
        %v572 = vpop.f32.mrb[0].mxu0
        %v573 = vadd.f32 0.0, %v572
        %v574 = vpop.f32.mrb[0].mxu0
        %575 = vdwg.mxu0
        %v576 = vadd.f32 %v434, %v573
        %s577 = sadd.s32 %s156, 1
        %s578 = smul.u32 %s577, 24
        %s579 = scalar_lea.vmem %s155, %s578
        %v580 = vld [vmem:[%s579] sm:$0xff]
        %v581 = vld [vmem:[%s579 + $0x8] sm:$0xff]
        %v582 = vld [vmem:[%s579 + $0x18] sm:$0xff]
        %v583 = vld [vmem:[%s579 + $0x20] sm:$0xff]
        %v584 = vld [vmem:[%s579 + $0x30] sm:$0xff]
        %v585 = vld [vmem:[%s579 + $0x38] sm:$0xff]
        %v586 = vld [vmem:[%s579 + $0x48] sm:$0xff]
        %v587 = vld [vmem:[%s579 + $0x50] sm:$0xff]
        %v588 = vld [vmem:[%s579 + $0x60] sm:$0xff]
        %v589 = vld [vmem:[%s579 + $0x68] sm:$0xff]
        %v590 = vld [vmem:[%s579 + $0x78] sm:$0xff]
        %v591 = vld [vmem:[%s579 + $0x80] sm:$0xff]
        %v592 = vld [vmem:[%s579 + $0x90] sm:$0xff]
        %v593 = vld [vmem:[%s579 + $0x98] sm:$0xff]
        %v594 = vld [vmem:[%s579 + $0xa8] sm:$0xff]
        %v595 = vld [vmem:[%s579 + $0xb0] sm:$0xff]
        %s596 = scalar_lea.vmem %s1, 24
        %v597 = vld [vmem:[%s596] sm:$0xff]
        %v599 = vsel %vm194, %v597, 0
        %v602 = vsel %vm194, %v580, 0
        %v605 = vsel %vm194, %v581, 0
        %v608 = vsel %vm194, %v582, 0
        %v611 = vsel %vm194, %v583, 0
        %v614 = vsel %vm194, %v584, 0
        %v617 = vsel %vm194, %v585, 0
        %v620 = vsel %vm194, %v586, 0
        %v623 = vsel %vm194, %v587, 0
        %v626 = vsel %vm194, %v588, 0
        %v629 = vsel %vm194, %v589, 0
        %v632 = vsel %vm194, %v590, 0
        %v635 = vsel %vm194, %v591, 0
        %v638 = vsel %vm194, %v592, 0
        %v641 = vsel %vm194, %v593, 0
        %v644 = vsel %vm194, %v594, 0
        %v647 = vsel %vm194, %v595, 0
        %649 = vmatprep.subr.mxu0 0.0
        %650 = vmatpush1.xpose.msra.mxu0 %v602
        %651 = vmatprep.subr.mxu0 0.0
        %652 = vmatpush1.xpose.msra.mxu0 %v605
        %653 = vmatprep.subr.mxu0 0.0
        %654 = vmatpush1.xpose.msra.mxu0 %v608
        %655 = vmatprep.subr.mxu0 0.0
        %656 = vmatpush1.xpose.msra.mxu0 %v611
        %657 = vmatprep.subr.mxu0 0.0
        %658 = vmatpush1.xpose.msra.mxu0 %v614
        %659 = vmatprep.subr.mxu0 0.0
        %660 = vmatpush1.xpose.msra.mxu0 %v617
        %661 = vmatprep.subr.mxu0 0.0
        %662 = vmatpush1.xpose.msra.mxu0 %v620
        %663 = vmatprep.subr.mxu0 0.0
        %664 = vmatpush1.xpose.msra.mxu0 %v623
        %665 = vmatprep.subr.mxu0 0.0
        %666 = vmatpush1.xpose.msra.mxu0 %v626
        %667 = vmatprep.subr.mxu0 0.0
        %668 = vmatpush1.xpose.msra.mxu0 %v629
        %669 = vmatprep.subr.mxu0 0.0
        %670 = vmatpush1.xpose.msra.mxu0 %v632
        %671 = vmatprep.subr.mxu0 0.0
        %672 = vmatpush1.xpose.msra.mxu0 %v635
        %673 = vmatprep.subr.mxu0 0.0
        %674 = vmatpush1.xpose.msra.mxu0 %v638
        %675 = vmatprep.subr.mxu0 0.0
        %676 = vmatpush1.xpose.msra.mxu0 %v641
        %677 = vmatprep.subr.mxu0 0.0
        %678 = vmatpush1.xpose.msra.mxu0 %v644
        %679 = vmatprep.subr.mxu0 0.0
        %680 = vmatpush1.xpose.msra.mxu0 %v647
        %681 = vmatprep.subr.mxu0 0.0
        %682 = vmatpush1.xpose.msra.mxu0 0.0
        %683 = vmatprep.subr.mxu0 0.0
        %684 = vmatpush1.xpose.msra.mxu0 0.0
        %685 = vmatprep.subr.mxu0 0.0
        %686 = vmatpush1.xpose.msra.mxu0 0.0
        %687 = vmatprep.subr.mxu0 0.0
        %688 = vmatpush1.xpose.msra.mxu0 0.0
        %689 = vmatprep.subr.mxu0 0.0
        %690 = vmatpush1.xpose.msra.mxu0 0.0
        %691 = vmatprep.subr.mxu0 0.0
        %692 = vmatpush1.xpose.msra.mxu0 0.0
        %693 = vmatprep.subr.mxu0 0.0
        %694 = vmatpush1.xpose.msra.mxu0 0.0
        %695 = vmatprep.subr.mxu0 0.0
        %696 = vmatpush1.xpose.msra.mxu0 0.0
        %697 = vmatprep.subr.mxu0 0.0
        %698 = vmatpush1.xpose.msra.mxu0 0.0
        %699 = vmatprep.subr.mxu0 0.0
        %700 = vmatpush1.xpose.msra.mxu0 0.0
        %701 = vmatprep.subr.mxu0 0.0
        %702 = vmatpush1.xpose.msra.mxu0 0.0
        %703 = vmatprep.subr.mxu0 0.0
        %704 = vmatpush1.xpose.msra.mxu0 0.0
        %705 = vmatprep.subr.mxu0 0.0
        %706 = vmatpush1.xpose.msra.mxu0 0.0
        %707 = vmatprep.subr.mxu0 0.0
        %708 = vmatpush1.xpose.msra.mxu0 0.0
        %709 = vmatprep.subr.mxu0 0.0
        %710 = vmatpush1.xpose.msra.mxu0 0.0
        %711 = vmatprep.subr.mxu0 0.0
        %712 = vmatpush1.xpose.msra.mxu0 0.0
        %713 = vmatprep.mubr.f32.mxu0 0.0
        %714 = vmatmul.mubr.f32.gmra.mrb[0].mxu0 %v599
        %v715 = vpop.f32.mrb[0].mxu0
        %v716 = vadd.f32 0.0, %v715
        %v717 = vpop.f32.mrb[0].mxu0
        %718 = vdwg.mxu0
        %v719 = vadd.f32 %v576, %v716
        %v720 = vld [vmem:[%s579 + $0x1] sm:$0xff]
        %v721 = vld [vmem:[%s579 + $0x9] sm:$0xff]
        %v722 = vld [vmem:[%s579 + $0x19] sm:$0xff]
        %v723 = vld [vmem:[%s579 + $0x21] sm:$0xff]
        %v724 = vld [vmem:[%s579 + $0x31] sm:$0xff]
        %v725 = vld [vmem:[%s579 + $0x39] sm:$0xff]
        %v726 = vld [vmem:[%s579 + $0x49] sm:$0xff]
        %v727 = vld [vmem:[%s579 + $0x51] sm:$0xff]
        %v728 = vld [vmem:[%s579 + $0x61] sm:$0xff]
        %v729 = vld [vmem:[%s579 + $0x69] sm:$0xff]
        %v730 = vld [vmem:[%s579 + $0x79] sm:$0xff]
        %v731 = vld [vmem:[%s579 + $0x81] sm:$0xff]
        %v732 = vld [vmem:[%s579 + $0x91] sm:$0xff]
        %v733 = vld [vmem:[%s579 + $0x99] sm:$0xff]
        %v734 = vld [vmem:[%s579 + $0xa9] sm:$0xff]
        %v735 = vld [vmem:[%s579 + $0xb1] sm:$0xff]
        %s736 = scalar_lea.vmem %s1, 32
        %v737 = vld [vmem:[%s736] sm:$0xff]
        %v739 = vsel %vm194, %v737, 0
        %v742 = vsel %vm194, %v720, 0
        %v745 = vsel %vm194, %v721, 0
        %v748 = vsel %vm194, %v722, 0
        %v751 = vsel %vm194, %v723, 0
        %v754 = vsel %vm194, %v724, 0
        %v757 = vsel %vm194, %v725, 0
        %v760 = vsel %vm194, %v726, 0
        %v763 = vsel %vm194, %v727, 0
        %v766 = vsel %vm194, %v728, 0
        %v769 = vsel %vm194, %v729, 0
        %v772 = vsel %vm194, %v730, 0
        %v775 = vsel %vm194, %v731, 0
        %v778 = vsel %vm194, %v732, 0
        %v781 = vsel %vm194, %v733, 0
        %v784 = vsel %vm194, %v734, 0
        %v787 = vsel %vm194, %v735, 0
        %789 = vmatprep.subr.mxu0 0.0
        %790 = vmatpush1.xpose.msra.mxu0 %v742
        %791 = vmatprep.subr.mxu0 0.0
        %792 = vmatpush1.xpose.msra.mxu0 %v745
        %793 = vmatprep.subr.mxu0 0.0
        %794 = vmatpush1.xpose.msra.mxu0 %v748
        %795 = vmatprep.subr.mxu0 0.0
        %796 = vmatpush1.xpose.msra.mxu0 %v751
        %797 = vmatprep.subr.mxu0 0.0
        %798 = vmatpush1.xpose.msra.mxu0 %v754
        %799 = vmatprep.subr.mxu0 0.0
        %800 = vmatpush1.xpose.msra.mxu0 %v757
        %801 = vmatprep.subr.mxu0 0.0
        %802 = vmatpush1.xpose.msra.mxu0 %v760
        %803 = vmatprep.subr.mxu0 0.0
        %804 = vmatpush1.xpose.msra.mxu0 %v763
        %805 = vmatprep.subr.mxu0 0.0
        %806 = vmatpush1.xpose.msra.mxu0 %v766
        %807 = vmatprep.subr.mxu0 0.0
        %808 = vmatpush1.xpose.msra.mxu0 %v769
        %809 = vmatprep.subr.mxu0 0.0
        %810 = vmatpush1.xpose.msra.mxu0 %v772
        %811 = vmatprep.subr.mxu0 0.0
        %812 = vmatpush1.xpose.msra.mxu0 %v775
        %813 = vmatprep.subr.mxu0 0.0
        %814 = vmatpush1.xpose.msra.mxu0 %v778
        %815 = vmatprep.subr.mxu0 0.0
        %816 = vmatpush1.xpose.msra.mxu0 %v781
        %817 = vmatprep.subr.mxu0 0.0
        %818 = vmatpush1.xpose.msra.mxu0 %v784
        %819 = vmatprep.subr.mxu0 0.0
        %820 = vmatpush1.xpose.msra.mxu0 %v787
        %821 = vmatprep.subr.mxu0 0.0
        %822 = vmatpush1.xpose.msra.mxu0 0.0
        %823 = vmatprep.subr.mxu0 0.0
        %824 = vmatpush1.xpose.msra.mxu0 0.0
        %825 = vmatprep.subr.mxu0 0.0
        %826 = vmatpush1.xpose.msra.mxu0 0.0
        %827 = vmatprep.subr.mxu0 0.0
        %828 = vmatpush1.xpose.msra.mxu0 0.0
        %829 = vmatprep.subr.mxu0 0.0
        %830 = vmatpush1.xpose.msra.mxu0 0.0
        %831 = vmatprep.subr.mxu0 0.0
        %832 = vmatpush1.xpose.msra.mxu0 0.0
        %833 = vmatprep.subr.mxu0 0.0
        %834 = vmatpush1.xpose.msra.mxu0 0.0
        %835 = vmatprep.subr.mxu0 0.0
        %836 = vmatpush1.xpose.msra.mxu0 0.0
        %837 = vmatprep.subr.mxu0 0.0
        %838 = vmatpush1.xpose.msra.mxu0 0.0
        %839 = vmatprep.subr.mxu0 0.0
        %840 = vmatpush1.xpose.msra.mxu0 0.0
        %841 = vmatprep.subr.mxu0 0.0
        %842 = vmatpush1.xpose.msra.mxu0 0.0
        %843 = vmatprep.subr.mxu0 0.0
        %844 = vmatpush1.xpose.msra.mxu0 0.0
        %845 = vmatprep.subr.mxu0 0.0
        %846 = vmatpush1.xpose.msra.mxu0 0.0
        %847 = vmatprep.subr.mxu0 0.0
        %848 = vmatpush1.xpose.msra.mxu0 0.0
        %849 = vmatprep.subr.mxu0 0.0
        %850 = vmatpush1.xpose.msra.mxu0 0.0
        %851 = vmatprep.subr.mxu0 0.0
        %852 = vmatpush1.xpose.msra.mxu0 0.0
        %853 = vmatprep.mubr.f32.mxu0 0.0
        %854 = vmatmul.mubr.f32.gmra.mrb[0].mxu0 %v739
        %v855 = vpop.f32.mrb[0].mxu0
        %v856 = vadd.f32 0.0, %v855
        %v857 = vpop.f32.mrb[0].mxu0
        %858 = vdwg.mxu0
        %v859 = vadd.f32 %v719, %v856
        %v860 = vld [vmem:[%s579 + $0x2] sm:$0xff]
        %v861 = vld [vmem:[%s579 + $0xa] sm:$0xff]
        %v862 = vld [vmem:[%s579 + $0x1a] sm:$0xff]
        %v863 = vld [vmem:[%s579 + $0x22] sm:$0xff]
        %v864 = vld [vmem:[%s579 + $0x32] sm:$0xff]
        %v865 = vld [vmem:[%s579 + $0x3a] sm:$0xff]
        %v866 = vld [vmem:[%s579 + $0x4a] sm:$0xff]
        %v867 = vld [vmem:[%s579 + $0x52] sm:$0xff]
        %v868 = vld [vmem:[%s579 + $0x62] sm:$0xff]
        %v869 = vld [vmem:[%s579 + $0x6a] sm:$0xff]
        %v870 = vld [vmem:[%s579 + $0x7a] sm:$0xff]
        %v871 = vld [vmem:[%s579 + $0x82] sm:$0xff]
        %v872 = vld [vmem:[%s579 + $0x92] sm:$0xff]
        %v873 = vld [vmem:[%s579 + $0x9a] sm:$0xff]
        %v874 = vld [vmem:[%s579 + $0xaa] sm:$0xff]
        %v875 = vld [vmem:[%s579 + $0xb2] sm:$0xff]
        %s876 = scalar_lea.vmem %s1, 40
        %v877 = vld [vmem:[%s876] sm:$0xff]
        %v879 = vsel %vm194, %v877, 0
        %v882 = vsel %vm194, %v860, 0
        %v885 = vsel %vm194, %v861, 0
        %v888 = vsel %vm194, %v862, 0
        %v891 = vsel %vm194, %v863, 0
        %v894 = vsel %vm194, %v864, 0
        %v897 = vsel %vm194, %v865, 0
        %v900 = vsel %vm194, %v866, 0
        %v903 = vsel %vm194, %v867, 0
        %v906 = vsel %vm194, %v868, 0
        %v909 = vsel %vm194, %v869, 0
        %v912 = vsel %vm194, %v870, 0
        %v915 = vsel %vm194, %v871, 0
        %v918 = vsel %vm194, %v872, 0
        %v921 = vsel %vm194, %v873, 0
        %v924 = vsel %vm194, %v874, 0
        %v927 = vsel %vm194, %v875, 0
        %929 = vmatprep.subr.mxu0 0.0
        %930 = vmatpush1.xpose.msra.mxu0 %v882
        %931 = vmatprep.subr.mxu0 0.0
        %932 = vmatpush1.xpose.msra.mxu0 %v885
        %933 = vmatprep.subr.mxu0 0.0
        %934 = vmatpush1.xpose.msra.mxu0 %v888
        %935 = vmatprep.subr.mxu0 0.0
        %936 = vmatpush1.xpose.msra.mxu0 %v891
        %937 = vmatprep.subr.mxu0 0.0
        %938 = vmatpush1.xpose.msra.mxu0 %v894
        %939 = vmatprep.subr.mxu0 0.0
        %940 = vmatpush1.xpose.msra.mxu0 %v897
        %941 = vmatprep.subr.mxu0 0.0
        %942 = vmatpush1.xpose.msra.mxu0 %v900
        %943 = vmatprep.subr.mxu0 0.0
        %944 = vmatpush1.xpose.msra.mxu0 %v903
        %945 = vmatprep.subr.mxu0 0.0
        %946 = vmatpush1.xpose.msra.mxu0 %v906
        %947 = vmatprep.subr.mxu0 0.0
        %948 = vmatpush1.xpose.msra.mxu0 %v909
        %949 = vmatprep.subr.mxu0 0.0
        %950 = vmatpush1.xpose.msra.mxu0 %v912
        %951 = vmatprep.subr.mxu0 0.0
        %952 = vmatpush1.xpose.msra.mxu0 %v915
        %953 = vmatprep.subr.mxu0 0.0
        %954 = vmatpush1.xpose.msra.mxu0 %v918
        %955 = vmatprep.subr.mxu0 0.0
        %956 = vmatpush1.xpose.msra.mxu0 %v921
        %957 = vmatprep.subr.mxu0 0.0
        %958 = vmatpush1.xpose.msra.mxu0 %v924
        %959 = vmatprep.subr.mxu0 0.0
        %960 = vmatpush1.xpose.msra.mxu0 %v927
        %961 = vmatprep.subr.mxu0 0.0
        %962 = vmatpush1.xpose.msra.mxu0 0.0
        %963 = vmatprep.subr.mxu0 0.0
        %964 = vmatpush1.xpose.msra.mxu0 0.0
        %965 = vmatprep.subr.mxu0 0.0
        %966 = vmatpush1.xpose.msra.mxu0 0.0
        %967 = vmatprep.subr.mxu0 0.0
        %968 = vmatpush1.xpose.msra.mxu0 0.0
        %969 = vmatprep.subr.mxu0 0.0
        %970 = vmatpush1.xpose.msra.mxu0 0.0
        %971 = vmatprep.subr.mxu0 0.0
        %972 = vmatpush1.xpose.msra.mxu0 0.0
        %973 = vmatprep.subr.mxu0 0.0
        %974 = vmatpush1.xpose.msra.mxu0 0.0
        %975 = vmatprep.subr.mxu0 0.0
        %976 = vmatpush1.xpose.msra.mxu0 0.0
        %977 = vmatprep.subr.mxu0 0.0
        %978 = vmatpush1.xpose.msra.mxu0 0.0
        %979 = vmatprep.subr.mxu0 0.0
        %980 = vmatpush1.xpose.msra.mxu0 0.0
        %981 = vmatprep.subr.mxu0 0.0
        %982 = vmatpush1.xpose.msra.mxu0 0.0
        %983 = vmatprep.subr.mxu0 0.0
        %984 = vmatpush1.xpose.msra.mxu0 0.0
        %985 = vmatprep.subr.mxu0 0.0
        %986 = vmatpush1.xpose.msra.mxu0 0.0
        %987 = vmatprep.subr.mxu0 0.0
        %988 = vmatpush1.xpose.msra.mxu0 0.0
        %989 = vmatprep.subr.mxu0 0.0
        %990 = vmatpush1.xpose.msra.mxu0 0.0
        %991 = vmatprep.subr.mxu0 0.0
        %992 = vmatpush1.xpose.msra.mxu0 0.0
        %993 = vmatprep.mubr.f32.mxu0 0.0
        %994 = vmatmul.mubr.f32.gmra.mrb[0].mxu0 %v879
        %v995 = vpop.f32.mrb[0].mxu0
        %v996 = vadd.f32 0.0, %v995
        %v997 = vpop.f32.mrb[0].mxu0
        %998 = vdwg.mxu0
        %v999 = vadd.f32 %v859, %v996
        %s1000 = sadd.s32 %s156, 2
        %s1001 = smul.u32 %s1000, 24
        %s1002 = scalar_lea.vmem %s155, %s1001
        %v1003 = vld [vmem:[%s1002] sm:$0xff]
        %v1004 = vld [vmem:[%s1002 + $0x8] sm:$0xff]
        %v1005 = vld [vmem:[%s1002 + $0x18] sm:$0xff]
        %v1006 = vld [vmem:[%s1002 + $0x20] sm:$0xff]
        %v1007 = vld [vmem:[%s1002 + $0x30] sm:$0xff]
        %v1008 = vld [vmem:[%s1002 + $0x38] sm:$0xff]
        %v1009 = vld [vmem:[%s1002 + $0x48] sm:$0xff]
        %v1010 = vld [vmem:[%s1002 + $0x50] sm:$0xff]
        %v1011 = vld [vmem:[%s1002 + $0x60] sm:$0xff]
        %v1012 = vld [vmem:[%s1002 + $0x68] sm:$0xff]
        %v1013 = vld [vmem:[%s1002 + $0x78] sm:$0xff]
        %v1014 = vld [vmem:[%s1002 + $0x80] sm:$0xff]
        %v1015 = vld [vmem:[%s1002 + $0x90] sm:$0xff]
        %v1016 = vld [vmem:[%s1002 + $0x98] sm:$0xff]
        %v1017 = vld [vmem:[%s1002 + $0xa8] sm:$0xff]
        %v1018 = vld [vmem:[%s1002 + $0xb0] sm:$0xff]
        %s1019 = scalar_lea.vmem %s1, 48
        %v1020 = vld [vmem:[%s1019] sm:$0xff]
        %v1022 = vsel %vm194, %v1020, 0
        %v1025 = vsel %vm194, %v1003, 0
        %v1028 = vsel %vm194, %v1004, 0
        %v1031 = vsel %vm194, %v1005, 0
        %v1034 = vsel %vm194, %v1006, 0
        %v1037 = vsel %vm194, %v1007, 0
        %v1040 = vsel %vm194, %v1008, 0
        %v1043 = vsel %vm194, %v1009, 0
        %v1046 = vsel %vm194, %v1010, 0
        %v1049 = vsel %vm194, %v1011, 0
        %v1052 = vsel %vm194, %v1012, 0
        %v1055 = vsel %vm194, %v1013, 0
        %v1058 = vsel %vm194, %v1014, 0
        %v1061 = vsel %vm194, %v1015, 0
        %v1064 = vsel %vm194, %v1016, 0
        %v1067 = vsel %vm194, %v1017, 0
        %v1070 = vsel %vm194, %v1018, 0
        %1072 = vmatprep.subr.mxu0 0.0
        %1073 = vmatpush1.xpose.msra.mxu0 %v1025
        %1074 = vmatprep.subr.mxu0 0.0
        %1075 = vmatpush1.xpose.msra.mxu0 %v1028
        %1076 = vmatprep.subr.mxu0 0.0
        %1077 = vmatpush1.xpose.msra.mxu0 %v1031
        %1078 = vmatprep.subr.mxu0 0.0
        %1079 = vmatpush1.xpose.msra.mxu0 %v1034
        %1080 = vmatprep.subr.mxu0 0.0
        %1081 = vmatpush1.xpose.msra.mxu0 %v1037
        %1082 = vmatprep.subr.mxu0 0.0
        %1083 = vmatpush1.xpose.msra.mxu0 %v1040
        %1084 = vmatprep.subr.mxu0 0.0
        %1085 = vmatpush1.xpose.msra.mxu0 %v1043
        %1086 = vmatprep.subr.mxu0 0.0
        %1087 = vmatpush1.xpose.msra.mxu0 %v1046
        %1088 = vmatprep.subr.mxu0 0.0
        %1089 = vmatpush1.xpose.msra.mxu0 %v1049
        %1090 = vmatprep.subr.mxu0 0.0
        %1091 = vmatpush1.xpose.msra.mxu0 %v1052
        %1092 = vmatprep.subr.mxu0 0.0
        %1093 = vmatpush1.xpose.msra.mxu0 %v1055
        %1094 = vmatprep.subr.mxu0 0.0
        %1095 = vmatpush1.xpose.msra.mxu0 %v1058
        %1096 = vmatprep.subr.mxu0 0.0
        %1097 = vmatpush1.xpose.msra.mxu0 %v1061
        %1098 = vmatprep.subr.mxu0 0.0
        %1099 = vmatpush1.xpose.msra.mxu0 %v1064
        %1100 = vmatprep.subr.mxu0 0.0
        %1101 = vmatpush1.xpose.msra.mxu0 %v1067
        %1102 = vmatprep.subr.mxu0 0.0
        %1103 = vmatpush1.xpose.msra.mxu0 %v1070
        %1104 = vmatprep.subr.mxu0 0.0
        %1105 = vmatpush1.xpose.msra.mxu0 0.0
        %1106 = vmatprep.subr.mxu0 0.0
        %1107 = vmatpush1.xpose.msra.mxu0 0.0
        %1108 = vmatprep.subr.mxu0 0.0
        %1109 = vmatpush1.xpose.msra.mxu0 0.0
        %1110 = vmatprep.subr.mxu0 0.0
        %1111 = vmatpush1.xpose.msra.mxu0 0.0
        %1112 = vmatprep.subr.mxu0 0.0
        %1113 = vmatpush1.xpose.msra.mxu0 0.0
        %1114 = vmatprep.subr.mxu0 0.0
        %1115 = vmatpush1.xpose.msra.mxu0 0.0
        %1116 = vmatprep.subr.mxu0 0.0
        %1117 = vmatpush1.xpose.msra.mxu0 0.0
        %1118 = vmatprep.subr.mxu0 0.0
        %1119 = vmatpush1.xpose.msra.mxu0 0.0
        %1120 = vmatprep.subr.mxu0 0.0
        %1121 = vmatpush1.xpose.msra.mxu0 0.0
        %1122 = vmatprep.subr.mxu0 0.0
        %1123 = vmatpush1.xpose.msra.mxu0 0.0
        %1124 = vmatprep.subr.mxu0 0.0
        %1125 = vmatpush1.xpose.msra.mxu0 0.0
        %1126 = vmatprep.subr.mxu0 0.0
        %1127 = vmatpush1.xpose.msra.mxu0 0.0
        %1128 = vmatprep.subr.mxu0 0.0
        %1129 = vmatpush1.xpose.msra.mxu0 0.0
        %1130 = vmatprep.subr.mxu0 0.0
        %1131 = vmatpush1.xpose.msra.mxu0 0.0
        %1132 = vmatprep.subr.mxu0 0.0
        %1133 = vmatpush1.xpose.msra.mxu0 0.0
        %1134 = vmatprep.subr.mxu0 0.0
        %1135 = vmatpush1.xpose.msra.mxu0 0.0
        %1136 = vmatprep.mubr.f32.mxu0 0.0
        %1137 = vmatmul.mubr.f32.gmra.mrb[0].mxu0 %v1022
        %v1138 = vpop.f32.mrb[0].mxu0
        %v1139 = vadd.f32 0.0, %v1138
        %v1140 = vpop.f32.mrb[0].mxu0
        %1141 = vdwg.mxu0
        %v1142 = vadd.f32 %v999, %v1139
        %v1143 = vld [vmem:[%s1002 + $0x1] sm:$0xff]
        %v1144 = vld [vmem:[%s1002 + $0x9] sm:$0xff]
        %v1145 = vld [vmem:[%s1002 + $0x19] sm:$0xff]
        %v1146 = vld [vmem:[%s1002 + $0x21] sm:$0xff]
        %v1147 = vld [vmem:[%s1002 + $0x31] sm:$0xff]
        %v1148 = vld [vmem:[%s1002 + $0x39] sm:$0xff]
        %v1149 = vld [vmem:[%s1002 + $0x49] sm:$0xff]
        %v1150 = vld [vmem:[%s1002 + $0x51] sm:$0xff]
        %v1151 = vld [vmem:[%s1002 + $0x61] sm:$0xff]
        %v1152 = vld [vmem:[%s1002 + $0x69] sm:$0xff]
        %v1153 = vld [vmem:[%s1002 + $0x79] sm:$0xff]
        %v1154 = vld [vmem:[%s1002 + $0x81] sm:$0xff]
        %v1155 = vld [vmem:[%s1002 + $0x91] sm:$0xff]
        %v1156 = vld [vmem:[%s1002 + $0x99] sm:$0xff]
        %v1157 = vld [vmem:[%s1002 + $0xa9] sm:$0xff]
        %v1158 = vld [vmem:[%s1002 + $0xb1] sm:$0xff]
        %s1159 = scalar_lea.vmem %s1, 56
        %v1160 = vld [vmem:[%s1159] sm:$0xff]
        %v1162 = vsel %vm194, %v1160, 0
        %v1165 = vsel %vm194, %v1143, 0
        %v1168 = vsel %vm194, %v1144, 0
        %v1171 = vsel %vm194, %v1145, 0
        %v1174 = vsel %vm194, %v1146, 0
        %v1177 = vsel %vm194, %v1147, 0
        %v1180 = vsel %vm194, %v1148, 0
        %v1183 = vsel %vm194, %v1149, 0
        %v1186 = vsel %vm194, %v1150, 0
        %v1189 = vsel %vm194, %v1151, 0
        %v1192 = vsel %vm194, %v1152, 0
        %v1195 = vsel %vm194, %v1153, 0
        %v1198 = vsel %vm194, %v1154, 0
        %v1201 = vsel %vm194, %v1155, 0
        %v1204 = vsel %vm194, %v1156, 0
        %v1207 = vsel %vm194, %v1157, 0
        %v1210 = vsel %vm194, %v1158, 0
        %1212 = vmatprep.subr.mxu0 0.0
        %1213 = vmatpush1.xpose.msra.mxu0 %v1165
        %1214 = vmatprep.subr.mxu0 0.0
        %1215 = vmatpush1.xpose.msra.mxu0 %v1168
        %1216 = vmatprep.subr.mxu0 0.0
        %1217 = vmatpush1.xpose.msra.mxu0 %v1171
        %1218 = vmatprep.subr.mxu0 0.0
        %1219 = vmatpush1.xpose.msra.mxu0 %v1174
        %1220 = vmatprep.subr.mxu0 0.0
        %1221 = vmatpush1.xpose.msra.mxu0 %v1177
        %1222 = vmatprep.subr.mxu0 0.0
        %1223 = vmatpush1.xpose.msra.mxu0 %v1180
        %1224 = vmatprep.subr.mxu0 0.0
        %1225 = vmatpush1.xpose.msra.mxu0 %v1183
        %1226 = vmatprep.subr.mxu0 0.0
        %1227 = vmatpush1.xpose.msra.mxu0 %v1186
        %1228 = vmatprep.subr.mxu0 0.0
        %1229 = vmatpush1.xpose.msra.mxu0 %v1189
        %1230 = vmatprep.subr.mxu0 0.0
        %1231 = vmatpush1.xpose.msra.mxu0 %v1192
        %1232 = vmatprep.subr.mxu0 0.0
        %1233 = vmatpush1.xpose.msra.mxu0 %v1195
        %1234 = vmatprep.subr.mxu0 0.0
        %1235 = vmatpush1.xpose.msra.mxu0 %v1198
        %1236 = vmatprep.subr.mxu0 0.0
        %1237 = vmatpush1.xpose.msra.mxu0 %v1201
        %1238 = vmatprep.subr.mxu0 0.0
        %1239 = vmatpush1.xpose.msra.mxu0 %v1204
        %1240 = vmatprep.subr.mxu0 0.0
        %1241 = vmatpush1.xpose.msra.mxu0 %v1207
        %1242 = vmatprep.subr.mxu0 0.0
        %1243 = vmatpush1.xpose.msra.mxu0 %v1210
        %1244 = vmatprep.subr.mxu0 0.0
        %1245 = vmatpush1.xpose.msra.mxu0 0.0
        %1246 = vmatprep.subr.mxu0 0.0
        %1247 = vmatpush1.xpose.msra.mxu0 0.0
        %1248 = vmatprep.subr.mxu0 0.0
        %1249 = vmatpush1.xpose.msra.mxu0 0.0
        %1250 = vmatprep.subr.mxu0 0.0
        %1251 = vmatpush1.xpose.msra.mxu0 0.0
        %1252 = vmatprep.subr.mxu0 0.0
        %1253 = vmatpush1.xpose.msra.mxu0 0.0
        %1254 = vmatprep.subr.mxu0 0.0
        %1255 = vmatpush1.xpose.msra.mxu0 0.0
        %1256 = vmatprep.subr.mxu0 0.0
        %1257 = vmatpush1.xpose.msra.mxu0 0.0
        %1258 = vmatprep.subr.mxu0 0.0
        %1259 = vmatpush1.xpose.msra.mxu0 0.0
        %1260 = vmatprep.subr.mxu0 0.0
        %1261 = vmatpush1.xpose.msra.mxu0 0.0
        %1262 = vmatprep.subr.mxu0 0.0
        %1263 = vmatpush1.xpose.msra.mxu0 0.0
        %1264 = vmatprep.subr.mxu0 0.0
        %1265 = vmatpush1.xpose.msra.mxu0 0.0
        %1266 = vmatprep.subr.mxu0 0.0
        %1267 = vmatpush1.xpose.msra.mxu0 0.0
        %1268 = vmatprep.subr.mxu0 0.0
        %1269 = vmatpush1.xpose.msra.mxu0 0.0
        %1270 = vmatprep.subr.mxu0 0.0
        %1271 = vmatpush1.xpose.msra.mxu0 0.0
        %1272 = vmatprep.subr.mxu0 0.0
        %1273 = vmatpush1.xpose.msra.mxu0 0.0
        %1274 = vmatprep.subr.mxu0 0.0
        %1275 = vmatpush1.xpose.msra.mxu0 0.0
        %1276 = vmatprep.mubr.f32.mxu0 0.0
        %1277 = vmatmul.mubr.f32.gmra.mrb[0].mxu0 %v1162
        %v1278 = vpop.f32.mrb[0].mxu0
        %v1279 = vadd.f32 0.0, %v1278
        %v1280 = vpop.f32.mrb[0].mxu0
        %1281 = vdwg.mxu0
        %v1282 = vadd.f32 %v1142, %v1279
        %v1283 = vld [vmem:[%s1002 + $0x2] sm:$0xff]
        %v1284 = vld [vmem:[%s1002 + $0xa] sm:$0xff]
        %v1285 = vld [vmem:[%s1002 + $0x1a] sm:$0xff]
        %v1286 = vld [vmem:[%s1002 + $0x22] sm:$0xff]
        %v1287 = vld [vmem:[%s1002 + $0x32] sm:$0xff]
        %v1288 = vld [vmem:[%s1002 + $0x3a] sm:$0xff]
        %v1289 = vld [vmem:[%s1002 + $0x4a] sm:$0xff]
        %v1290 = vld [vmem:[%s1002 + $0x52] sm:$0xff]
        %v1291 = vld [vmem:[%s1002 + $0x62] sm:$0xff]
        %v1292 = vld [vmem:[%s1002 + $0x6a] sm:$0xff]
        %v1293 = vld [vmem:[%s1002 + $0x7a] sm:$0xff]
        %v1294 = vld [vmem:[%s1002 + $0x82] sm:$0xff]
        %v1295 = vld [vmem:[%s1002 + $0x92] sm:$0xff]
        %v1296 = vld [vmem:[%s1002 + $0x9a] sm:$0xff]
        %v1297 = vld [vmem:[%s1002 + $0xaa] sm:$0xff]
        %v1298 = vld [vmem:[%s1002 + $0xb2] sm:$0xff]
        %s1299 = scalar_lea.vmem %s1, 64
        %v1300 = vld [vmem:[%s1299] sm:$0xff]
        %v1302 = vsel %vm194, %v1300, 0
        %v1305 = vsel %vm194, %v1283, 0
        %v1308 = vsel %vm194, %v1284, 0
        %v1311 = vsel %vm194, %v1285, 0
        %v1314 = vsel %vm194, %v1286, 0
        %v1317 = vsel %vm194, %v1287, 0
        %v1320 = vsel %vm194, %v1288, 0
        %v1323 = vsel %vm194, %v1289, 0
        %v1326 = vsel %vm194, %v1290, 0
        %v1329 = vsel %vm194, %v1291, 0
        %v1332 = vsel %vm194, %v1292, 0
        %v1335 = vsel %vm194, %v1293, 0
        %v1338 = vsel %vm194, %v1294, 0
        %v1341 = vsel %vm194, %v1295, 0
        %v1344 = vsel %vm194, %v1296, 0
        %v1347 = vsel %vm194, %v1297, 0
        %v1350 = vsel %vm194, %v1298, 0
        %1352 = vmatprep.subr.mxu0 0.0
        %1353 = vmatpush1.xpose.msra.mxu0 %v1305
        %1354 = vmatprep.subr.mxu0 0.0
        %1355 = vmatpush1.xpose.msra.mxu0 %v1308
        %1356 = vmatprep.subr.mxu0 0.0
        %1357 = vmatpush1.xpose.msra.mxu0 %v1311
        %1358 = vmatprep.subr.mxu0 0.0
        %1359 = vmatpush1.xpose.msra.mxu0 %v1314
        %1360 = vmatprep.subr.mxu0 0.0
        %1361 = vmatpush1.xpose.msra.mxu0 %v1317
        %1362 = vmatprep.subr.mxu0 0.0
        %1363 = vmatpush1.xpose.msra.mxu0 %v1320
        %1364 = vmatprep.subr.mxu0 0.0
        %1365 = vmatpush1.xpose.msra.mxu0 %v1323
        %1366 = vmatprep.subr.mxu0 0.0
        %1367 = vmatpush1.xpose.msra.mxu0 %v1326
        %1368 = vmatprep.subr.mxu0 0.0
        %1369 = vmatpush1.xpose.msra.mxu0 %v1329
        %1370 = vmatprep.subr.mxu0 0.0
        %1371 = vmatpush1.xpose.msra.mxu0 %v1332
        %1372 = vmatprep.subr.mxu0 0.0
        %1373 = vmatpush1.xpose.msra.mxu0 %v1335
        %1374 = vmatprep.subr.mxu0 0.0
        %1375 = vmatpush1.xpose.msra.mxu0 %v1338
        %1376 = vmatprep.subr.mxu0 0.0
        %1377 = vmatpush1.xpose.msra.mxu0 %v1341
        %1378 = vmatprep.subr.mxu0 0.0
        %1379 = vmatpush1.xpose.msra.mxu0 %v1344
        %1380 = vmatprep.subr.mxu0 0.0
        %1381 = vmatpush1.xpose.msra.mxu0 %v1347
        %1382 = vmatprep.subr.mxu0 0.0
        %1383 = vmatpush1.xpose.msra.mxu0 %v1350
        %1384 = vmatprep.subr.mxu0 0.0
        %1385 = vmatpush1.xpose.msra.mxu0 0.0
        %1386 = vmatprep.subr.mxu0 0.0
        %1387 = vmatpush1.xpose.msra.mxu0 0.0
        %1388 = vmatprep.subr.mxu0 0.0
        %1389 = vmatpush1.xpose.msra.mxu0 0.0
        %1390 = vmatprep.subr.mxu0 0.0
        %1391 = vmatpush1.xpose.msra.mxu0 0.0
        %1392 = vmatprep.subr.mxu0 0.0
        %1393 = vmatpush1.xpose.msra.mxu0 0.0
        %1394 = vmatprep.subr.mxu0 0.0
        %1395 = vmatpush1.xpose.msra.mxu0 0.0
        %1396 = vmatprep.subr.mxu0 0.0
        %1397 = vmatpush1.xpose.msra.mxu0 0.0
        %1398 = vmatprep.subr.mxu0 0.0
        %1399 = vmatpush1.xpose.msra.mxu0 0.0
        %1400 = vmatprep.subr.mxu0 0.0
        %1401 = vmatpush1.xpose.msra.mxu0 0.0
        %1402 = vmatprep.subr.mxu0 0.0
        %1403 = vmatpush1.xpose.msra.mxu0 0.0
        %1404 = vmatprep.subr.mxu0 0.0
        %1405 = vmatpush1.xpose.msra.mxu0 0.0
        %1406 = vmatprep.subr.mxu0 0.0
        %1407 = vmatpush1.xpose.msra.mxu0 0.0
        %1408 = vmatprep.subr.mxu0 0.0
        %1409 = vmatpush1.xpose.msra.mxu0 0.0
        %1410 = vmatprep.subr.mxu0 0.0
        %1411 = vmatpush1.xpose.msra.mxu0 0.0
        %1412 = vmatprep.subr.mxu0 0.0
        %1413 = vmatpush1.xpose.msra.mxu0 0.0
        %1414 = vmatprep.subr.mxu0 0.0
        %1415 = vmatpush1.xpose.msra.mxu0 0.0
        %1416 = vmatprep.mubr.f32.mxu0 0.0
        %1417 = vmatmul.mubr.f32.gmra.mrb[0].mxu0 %v1302
        %v1418 = vpop.f32.mrb[0].mxu0
        %v1419 = vadd.f32 0.0, %v1418
        %v1420 = vpop.f32.mrb[0].mxu0
        %1421 = vdwg.mxu0
        %v1422 = vadd.f32 %v1282, %v1419
        %1423 = vst [vmem:[%s150] sm:$0xff] %v1422
        %s1424 = sand.u32 %s85, 1
        %s1425 = scalar_lea.sflag [#allocation3], %s1424
        %s1426 = sand.u32 %s85, 1
        %s1427 = smul.addr %s1426, 8
        %s1428 = scalar_lea.vmem [#allocation2], %s1427
        // Predicated region
        $region29: #{tpu_custom_call.1} parent=27 // pred_check
          %p1429 = pneg %p95
        $region30: #{tpu_custom_call.1} parent=27 // pred_check_branch
          %1431 = sbr.rel (%p1429) target = $region32
        $region31: #{tpu_custom_call.1} parent=27 // pred_region
          %s1433 = ssub.s32 128, 128
          %1434 = vsyncadd %s1425, %s1433
          %s1435 = smul.addr %s20, 2
          %s1436 = sadd.s32 %s21, %s1435
          %s1437 = smul.addr %s1436, 128
          %s1438 = scalar_lea.hbm %s2, %s1437
          %s1440 = sshll.u32 %s1428, 4
          %s1441 = int_to_ptr.vmem [resolvable:$true] %s1440
          %1443 = dma.vmem_to_hbm [thread:$0]  %s1441, 128, %s1438, %s1425
        $region32: #{tpu_custom_call.1} parent=27 // pred_fallthru
          _
      $region28: #{tpu_custom_call.1} parent=5 // pred_fallthru
        _
      %p1444 = scmp.le.s32.totalorder 2, %s11
      // Predicated region
      $region33: #{tpu_custom_call.1} parent=5 // pred_check
        %p1445 = pneg %p1444
      $region34: #{tpu_custom_call.1} parent=5 // pred_check_branch
        %1447 = sbr.rel (%p1445) target = $region36
      $region35: #{tpu_custom_call.1} parent=5 // pred_region
        %s1448 = ssub.s32 %s11, 2
        // Predicated region
        $region37: #{tpu_custom_call.1} parent=35 // pred_check
          %p1449 = pneg %p101
        $region38: #{tpu_custom_call.1} parent=35 // pred_check_branch
          %1451 = sbr.rel (%p1449) target = $region40
        $region39: #{tpu_custom_call.1} parent=35 // pred_region
          %s1452 = sand.u32 %s86, 1
          %s1453 = scalar_lea.sflag [#allocation3], %s1452
          %s1454 = sand.u32 %s86, 1
          %s1455 = smul.addr %s1454, 8
          %s1456 = scalar_lea.vmem [#allocation2], %s1455
          %1457 = dma.done %s1453, 128
        $region40: #{tpu_custom_call.1} parent=35 // pred_fallthru
          _
      $region36: #{tpu_custom_call.1} parent=5 // pred_fallthru
        _
    $region6: #{tpu_custom_call.1} parent=1 // loop_footer
      %s15 = sadd.s32 1, %s11
    $region7: #{tpu_custom_call.1} parent=1 // loop_footer_branch
      %10 = sbr.rel target = $region3
    $region8: #{tpu_custom_call.1} parent=1 // loop_exit
      _
    %1458 = vsyncpa [#allocation3], 1
    %s1459 = scalar_lea.sflag [#allocation3], 1
    %1460 = vsyncpa %s1459, 1

</llo_original>
